<compile_context>
chip_gen: v5e
topology: v5e:2x2
jax: 0.10.0
libtpu: 0.0.40
codegen_flags: <defaults>
</compile_context>

<pallas_src>
import math
import functools

import jax
import jax.numpy as jnp
from jax.experimental import pallas as pl
from jax.experimental.pallas import tpu as pltpu


# Sized for v7x's 64 MiB VMEM (with headroom); well within v5e/v6e's 128 MiB.
_VMEM_LIMIT = 48 * 1024 * 1024


# ---------------------------------------------------------------------------
# small helpers
# ---------------------------------------------------------------------------
def _pick_tile(dim, target):
    """Tile = target if it divides dim, else the full dim (small/ragged case)."""
    if dim <= target:
        return dim
    if dim % target == 0:
        return target
    return dim  # TODO(synk): masked edge tiles for ragged dims


def _largest_divisor_leq(n, cap):
    d = max(1, min(n, cap))
    while n % d:
        d -= 1
    return d


# ---------------------------------------------------------------------------
# Fused linear projection kernel:  y = x @ W + b     (W stored as (Din, Dout))
# Tiled over (M, N, K); reduction axis K last; f32 accumulator in VMEM.
# ---------------------------------------------------------------------------
def _matmul_bias_kernel(x_ref, w_ref, b_ref, o_ref, acc_ref):
    @pl.when(pl.program_id(2) == 0)
    def _():
        acc_ref[...] = jnp.zeros_like(acc_ref)

    acc_ref[...] += jnp.dot(x_ref[...], w_ref[...],
                            preferred_element_type=jnp.float32)

    @pl.when(pl.program_id(2) == pl.num_programs(2) - 1)
    def _():
        o_ref[...] = (acc_ref[...] + b_ref[...].astype(jnp.float32)).astype(o_ref.dtype)


def pallas_matmul_bias(x2d, w, b, *, tm=256, tn=512, tk=512):
    M, K = x2d.shape
    K2, N = w.shape
    assert K == K2 and b.shape == (N,)
    tm, tn, tk = _pick_tile(M, tm), _pick_tile(N, tn), _pick_tile(K, tk)
    grid = (M // tm, N // tn, K // tk)
    return pl.pallas_call(
        _matmul_bias_kernel,
        out_shape=jax.ShapeDtypeStruct((M, N), x2d.dtype),
        grid=grid,
        in_specs=[
            pl.BlockSpec((tm, tk), lambda i, j, k: (i, k)),
            pl.BlockSpec((tk, tn), lambda i, j, k: (k, j)),
            pl.BlockSpec((1, tn), lambda i, j, k: (0, j)),
        ],
        out_specs=pl.BlockSpec((tm, tn), lambda i, j, k: (i, j)),
        scratch_shapes=[pltpu.VMEM((tm, tn), jnp.float32)],
        compiler_params=pltpu.CompilerParams(
            dimension_semantics=("parallel", "parallel", "arbitrary"),
            vmem_limit_bytes=_VMEM_LIMIT),
    )(x2d, w, b.reshape(1, N))


# ---------------------------------------------------------------------------
# Attention kernel — one (batch, head-group, query-tile) per grid step.
# q/k/v blocks: (hb, tq, Dh) / (hb, Skv, Dh) / (hb, Skv, Dh); mask: (tq, Skv).
# K/V index_maps ignore the query axis, so they stay resident across q tiles.
# ---------------------------------------------------------------------------
def _attn_kernel(q_ref, k_ref, v_ref, m_ref, o_ref, p_ref, *, scale):
    q = q_ref[...] * scale          # fold 1/sqrt(d_dim) into q: O(tq*Dh), not O(tq*Skv)
    k = k_ref[...]
    v = v_ref[...]

    # Batched QK^T via dot_general batch dims — no explicit k.T relayout.
    s = jnp.einsum("hqd,hkd->hqk", q, k, preferred_element_type=jnp.float32)

    s_max = jnp.max(s, axis=-1, keepdims=True)
    e = jnp.exp(s - s_max)
    denom = jnp.sum(e, axis=-1, keepdims=True)
    # reciprocal+multiply instead of divide (approx=True would hit the EUP slot,
    # but is too coarse for the 1e-5 reference check in __main__).
    p = e * pl.reciprocal(denom, approx=False)

    # torch semantics: masked_fill AFTER softmax, rows NOT renormalized.
    p = jnp.where((m_ref[...] == 0)[None, :, :], jnp.float32(1e-9), p)

    o = jnp.einsum("hqk,hkd->hqd", p.astype(v.dtype), v,
                   preferred_element_type=jnp.float32)
    o_ref[...] = o.astype(o_ref.dtype)
    p_ref[...] = p.astype(p_ref.dtype)


def _choose_attn_tiles(H, Sq, Skv, Dh, itemsize=4, vmem_budget=24 * 1024 * 1024):
    tq = Sq if (Sq <= 256 or Sq % 256 != 0) else 256
    # per-head per-step VMEM (f32, x2 double buffering):
    #   q/o tiles ~ 2*tq*Dh, resident K/V ~ 2*Skv*Dh, scores + attn-map tile ~ 2*tq*Skv
    per_head = (2 * tq * Dh + 2 * Skv * Dh + 2 * tq * Skv) * itemsize * 2
    hb = _largest_divisor_leq(H, max(1, vmem_budget // max(per_head, 1)))
    return hb, tq


def pallas_attention(q, k, v, mask, d_dim):
    B, H, Sq, Dh = q.shape
    Skv = k.shape[2]
    hb, tq = _choose_attn_tiles(H, Sq, Skv, Dh)
    scale = 1.0 / math.sqrt(d_dim)
    kern = functools.partial(_attn_kernel, scale=scale)

    ctx, attn = pl.pallas_call(
        kern,
        out_shape=(jax.ShapeDtypeStruct((B, H, Sq, Dh), q.dtype),
                   jax.ShapeDtypeStruct((B, H, Sq, Skv), jnp.float32)),
        grid=(B, H // hb, Sq // tq),
        in_specs=[
            pl.BlockSpec((None, hb, tq, Dh), lambda b, hg, qi: (b, hg, qi, 0)),
            pl.BlockSpec((None, hb, Skv, Dh), lambda b, hg, qi: (b, hg, 0, 0)),
            pl.BlockSpec((None, hb, Skv, Dh), lambda b, hg, qi: (b, hg, 0, 0)),
            pl.BlockSpec((None, None, tq, Skv), lambda b, hg, qi: (b, 0, qi, 0)),
        ],
        out_specs=(
            pl.BlockSpec((None, hb, tq, Dh), lambda b, hg, qi: (b, hg, qi, 0)),
            pl.BlockSpec((None, hb, tq, Skv), lambda b, hg, qi: (b, hg, qi, 0)),
        ),
        compiler_params=pltpu.CompilerParams(
            dimension_semantics=("parallel", "parallel", "parallel"),
            vmem_limit_bytes=_VMEM_LIMIT),
    )(q, k, v, mask)
    return ctx, attn


# ---------------------------------------------------------------------------
# Module wrapper (mirrors the PyTorch module's forward pass)
# ---------------------------------------------------------------------------
class MultiHeadAttentionPallas:
    def __init__(self, num_heads, inner_states, key, cross_attn=False):
        assert inner_states % num_heads == 0
        self.num_heads = num_heads
        self.d_dim = inner_states
        self.cross_attn = cross_attn

        D = inner_states
        bound = 1.0 / math.sqrt(D)
        ks = jax.random.split(key, 6)
        # weights stored as (Din, Dout) so y = x @ W + b
        self.w1 = jax.random.uniform(ks[0], (D, D), jnp.float32, -bound, bound)
        self.b1 = jax.random.uniform(ks[1], (D,), jnp.float32, -bound, bound)
        self.w2 = jax.random.uniform(ks[2], (D, D), jnp.float32, -bound, bound)
        self.b2 = jax.random.uniform(ks[3], (D,), jnp.float32, -bound, bound)
        self.w3 = jax.random.uniform(ks[4], (D, D), jnp.float32, -bound, bound)
        self.b3 = jax.random.uniform(ks[5], (D,), jnp.float32, -bound, bound)

        # fused projection parameters: x is read once, matmul N dim is 3D (or 2D).
        self.w_qkv = jnp.concatenate([self.w1, self.w2, self.w3], axis=1)
        self.b_qkv = jnp.concatenate([self.b1, self.b2, self.b3])
        self.w_kv = jnp.concatenate([self.w2, self.w3], axis=1)
        self.b_kv = jnp.concatenate([self.b2, self.b3])

    def __call__(self, x, mask, enc_context=None):
        B, Sq, D = x.shape
        H, Dh = self.num_heads, D // self.num_heads

        if self.cross_attn:
            assert enc_context is not None
            Skv = enc_context.shape[1]
            q2d = pallas_matmul_bias(x.reshape(B * Sq, D), self.w1, self.b1)
            kv2d = pallas_matmul_bias(enc_context.reshape(B * Skv, D),
                                      self.w_kv, self.b_kv)
            q = q2d.reshape(B, Sq, H, Dh).transpose(0, 2, 1, 3)
            kv = kv2d.reshape(B, Skv, 2, H, Dh).transpose(2, 0, 3, 1, 4)
            k, v = kv[0], kv[1]
        else:
            qkv2d = pallas_matmul_bias(x.reshape(B * Sq, D), self.w_qkv, self.b_qkv)
            qkv = qkv2d.reshape(B, Sq, 3, H, Dh).transpose(2, 0, 3, 1, 4)
            q, k, v = qkv[0], qkv[1], qkv[2]
        # TODO(synk): fold the head split/merge transposes (here and below) into
        # the projection/attention BlockSpec index_maps to save two HBM round trips.

        ctx, attn_map = pallas_attention(q, k, v, mask, self.d_dim)
        out = ctx.transpose(0, 2, 1, 3).reshape(B, Sq, H * Dh)
        return out, attn_map


# ---------------------------------------------------------------------------
# Pure-JAX reference (mirrors torch semantics exactly) for correctness check
# ---------------------------------------------------------------------------
def reference_forward(mod, x, mask, enc_context=None):
    B, S, D = x.shape
    H = mod.num_heads

    def lin(t, w, b):
        return t @ w + b

    def split(t):
        b, s, d = t.shape
        return t.reshape(b, s, H, d // H).transpose(0, 2, 1, 3)

    kv_src = enc_context if mod.cross_attn else x
    q = split(lin(x, mod.w1, mod.b1))
    k = split(lin(kv_src, mod.w2, mod.b2))
    v = split(lin(kv_src, mod.w3, mod.b3))
    s = jnp.einsum("bhqd,bhkd->bhqk", q, k) / math.sqrt(mod.d_dim)
    p = jax.nn.softmax(s, axis=-1)
    p = jnp.where(mask == 0, jnp.float32(1e-9), p)
    o = jnp.einsum("bhqk,bhkd->bhqd", p, v)
    out = o.transpose(0, 2, 1, 3).reshape(B, S, D)
    return out, p


if __name__ == "__main__":
    B, S, D, H = 2, 8, 32, 4

    root = jax.random.PRNGKey(0)
    k_param, k_x = jax.random.split(root)

    mod = MultiHeadAttentionPallas(num_heads=H, inner_states=D, key=k_param)

    x = jax.random.normal(k_x, (B, S, D), dtype=jnp.float32)
    # causal mask stored as int8 (4x less HBM/VMEM than f32), broadcast over heads
    mask = jnp.broadcast_to(
        jnp.tril(jnp.ones((S, S), dtype=jnp.int8)), (B, 1, S, S))

    out, attn_map = mod(x, mask)
    out = jax.block_until_ready(out)
    attn_map = jax.block_until_ready(attn_map)

    ref_out, ref_attn = reference_forward(mod, x, mask)

    assert out.shape == (B, S, D)
    assert attn_map.shape == (B, H, S, S)
    assert jnp.allclose(out, ref_out, atol=1e-5, rtol=1e-5)
    assert jnp.allclose(attn_map, ref_attn, atol=1e-5, rtol=1e-5)

    print("KERNEL_OK")
</pallas_src>

<mosaic_0001>
module attributes {stable_mosaic.version = 11 : i64} {
  func.func @_matmul_bias_kernel(%arg0: i32, %arg1: i32, %arg2: i32, %arg3: memref<16x32xf32, #tpu.memory_space<vmem>>, %arg4: memref<32x96xf32, #tpu.memory_space<vmem>>, %arg5: memref<1x96xf32, #tpu.memory_space<vmem>>, %arg6: memref<16x96xf32, #tpu.memory_space<vmem>>, %arg7: memref<16x96xf32, #tpu.memory_space<vmem>>) attributes {dimension_semantics = [#tpu.dimension_semantics<parallel>, #tpu.dimension_semantics<parallel>, #tpu.dimension_semantics<arbitrary>], iteration_bounds = array<i64: 1, 1, 1>, scalar_prefetch = 0 : i64, scratch_operands = 1 : i64, tpu.core_type = #tpu.core_type<tc>, window_params = [{transform_indices = @transform_0, window_bounds = array<i64: 16, 32>}, {transform_indices = @transform_1, window_bounds = array<i64: 32, 96>}, {transform_indices = @transform_2, window_bounds = array<i64: 1, 96>}, {transform_indices = @transform_3, window_bounds = array<i64: 16, 96>}]} {
    %c0_i32 = arith.constant 0 : i32
    %0 = arith.cmpi eq, %arg2, %c0_i32 : i32
    %1 = arith.extui %0 : i1 to i32
    %c0_i32_0 = arith.constant 0 : i32
    %2 = arith.cmpi ne, %1, %c0_i32_0 : i32
    scf.if %2 {
      %cst_10 = arith.constant 0.000000e+00 : f32
      %12 = vector.broadcast %cst_10 : f32 to vector<16x96xf32>
      %c0_11 = arith.constant 0 : index
      %c0_12 = arith.constant 0 : index
      %13 = vector.load %arg7[%c0_11, %c0_12] : memref<16x96xf32, #tpu.memory_space<vmem>>, vector<16x96xf32>
      tpu.vector_store %arg7[%c0_11, %c0_12], %12 {strides = array<i32>} : memref<16x96xf32, #tpu.memory_space<vmem>>, vector<16x96xf32>,
    } else {
    }
    %c0 = arith.constant 0 : index
    %c0_1 = arith.constant 0 : index
    %3 = vector.load %arg7[%c0, %c0_1] : memref<16x96xf32, #tpu.memory_space<vmem>>, vector<16x96xf32>
    %c0_2 = arith.constant 0 : index
    %c0_3 = arith.constant 0 : index
    %4 = vector.load %arg3[%c0_2, %c0_3] : memref<16x32xf32, #tpu.memory_space<vmem>>, vector<16x32xf32>
    %c0_4 = arith.constant 0 : index
    %c0_5 = arith.constant 0 : index
    %5 = vector.load %arg4[%c0_4, %c0_5] : memref<32x96xf32, #tpu.memory_space<vmem>>, vector<32x96xf32>
    %cst = arith.constant dense<0.000000e+00> : vector<16x96xf32>
    %6 = tpu.matmul %4, %5, %cst {dimension_numbers = #tpu.dot_dimension_numbers<[1], [0], [0], [1], [0, 0, 1, 1], [], []>} : vector<16x32xf32>, vector<32x96xf32>, vector<16x96xf32> -> vector<16x96xf32>
    %7 = arith.addf %3, %6 : vector<16x96xf32>
    %c0_6 = arith.constant 0 : index
    %c0_7 = arith.constant 0 : index
    %8 = vector.load %arg7[%c0_6, %c0_7] : memref<16x96xf32, #tpu.memory_space<vmem>>, vector<16x96xf32>
    tpu.vector_store %arg7[%c0_6, %c0_7], %7 {strides = array<i32>} : memref<16x96xf32, #tpu.memory_space<vmem>>, vector<16x96xf32>,
    %c0_i32_8 = arith.constant 0 : i32
    %9 = arith.cmpi eq, %arg2, %c0_i32_8 : i32
    %10 = arith.extui %9 : i1 to i32
    %c0_i32_9 = arith.constant 0 : i32
    %11 = arith.cmpi ne, %10, %c0_i32_9 : i32
    scf.if %11 {
      %c0_10 = arith.constant 0 : index
      %c0_11 = arith.constant 0 : index
      %12 = vector.load %arg7[%c0_10, %c0_11] : memref<16x96xf32, #tpu.memory_space<vmem>>, vector<16x96xf32>
      %c0_12 = arith.constant 0 : index
      %c0_13 = arith.constant 0 : index
      %13 = vector.load %arg5[%c0_12, %c0_13] : memref<1x96xf32, #tpu.memory_space<vmem>>, vector<1x96xf32>
      %14 = vector.broadcast %13 : vector<1x96xf32> to vector<16x96xf32>
      %15 = arith.addf %12, %14 : vector<16x96xf32>
      %c0_14 = arith.constant 0 : index
      %c0_15 = arith.constant 0 : index
      %16 = vector.load %arg6[%c0_14, %c0_15] : memref<16x96xf32, #tpu.memory_space<vmem>>, vector<16x96xf32>
      tpu.vector_store %arg6[%c0_14, %c0_15], %15 {strides = array<i32>} : memref<16x96xf32, #tpu.memory_space<vmem>>, vector<16x96xf32>,
    } else {
    }
    return
  }
  func.func @transform_0(%arg0: i32, %arg1: i32, %arg2: i32) -> (i32, i32) {
    %c0_i32 = arith.constant 0 : i32
    return %arg0, %arg2 : i32, i32
  }
  func.func @transform_1(%arg0: i32, %arg1: i32, %arg2: i32) -> (i32, i32) {
    %c0_i32 = arith.constant 0 : i32
    return %arg2, %arg1 : i32, i32
  }
  func.func @transform_2(%arg0: i32, %arg1: i32, %arg2: i32) -> (i32, i32) {
    %c0_i32 = arith.constant 0 : i32
    %c0_i32_0 = arith.constant 0 : i32
    return %c0_i32, %arg1 : i32, i32
  }
  func.func @transform_3(%arg0: i32, %arg1: i32, %arg2: i32) -> (i32, i32) {
    %c0_i32 = arith.constant 0 : i32
    return %arg0, %arg1 : i32, i32
  }
}

</mosaic_0001>

<llo_original>
// kernel: tpu_custom_call.1
$region0: #{tpu_custom_call.1}
  #allocation0 [shape = 'u32[]', space=smem, size = 0x4, offset = 0x4, fixed_abs, tag = 'smem constant byte address 0x4 - core index']
  #allocation1 [shape = 'u32[72,128]{1,0:T(1,128)}', space=vmem, size = 0x9000, scoped, tag = 'internal scratch']
  #allocation2 [shape = 'f32[16,96]{1,0:T(8,128)}', space=vmem, size = 0x2000, scoped, tag = 'scratch operand']
  %s0 = inlined_call_operand.hbm [shape: f32[16,32], index: 0, kind: input, shape index: {}]
  %s1 = inlined_call_operand.hbm [shape: f32[32,96], index: 1, kind: input, shape index: {}]
  %s2 = inlined_call_operand.vmem [shape: f32[1,96], index: 2, kind: input, shape index: {}]
  %s3 = inlined_call_operand.hbm [shape: f32[16,96], index: 3, kind: output, shape index: {}]
  %s4 = sld [smem:[#allocation0]]
  $region38: #{tpu_custom_call.1} parent=0
    _
  %s6 = ssub.s32 1, %s4
  %s7 = scalar_select 0, %s6, %s4
  $region1: #{tpu_custom_call.1} parent=0
    #allocation3 [shape = 'u8[8192]{0}', space=vmem, size = 0x2000, scoped, tag = 'input window, operand 0, single buffered']
    #allocation4 [shape = 's32[1]{0}', space=sflag, size = 0x4, scoped, tag = 'scoped memory for tpu_custom_call.1']
    #allocation5 [shape = 's32[1]{0}', space=sflag, size = 0x4, scoped, tag = 'scoped memory for tpu_custom_call.1']
    #allocation6 [shape = 'u8[16384]{0}', space=vmem, size = 0x4000, scoped, tag = 'input window, operand 1, single buffered']
    #allocation7 [shape = 's32[1]{0}', space=sflag, size = 0x4, scoped, tag = 'scoped memory for tpu_custom_call.1']
    #allocation8 [shape = 'u8[8192]{0}', space=vmem, size = 0x2000, scoped, tag = 'output window, operand 0, single buffered']
    %8 = vsyncpa [#allocation4], 0
    %9 = vsyncpa [#allocation7], 0
    %10 = vsyncpa [#allocation5], 0
    // Predicated region
    $region2: #{tpu_custom_call.1} parent=1 // pred_check
      _
    $region3: #{tpu_custom_call.1} parent=1 // pred_check_branch
      %12 = sbr.rel (0) target = $region5
    $region4: #{tpu_custom_call.1} parent=1 // pred_region
      %14 = vsyncadd [#allocation4], 0
      %s15 = sshll.u32 %s0, 4
      %s16 = int_to_ptr.hbm [resolvable:$true] %s15
      %s17 = sshll.u32 [#allocation3], 4
      %s18 = int_to_ptr.vmem [resolvable:$true] %s17
      %23 = dma.hbm_to_vmem [thread:$0]  %s16, 256, %s18, [#allocation4], 128, 128, 8
    $region5: #{tpu_custom_call.1} parent=1 // pred_fallthru
      _
    // Predicated region
    $region6: #{tpu_custom_call.1} parent=1 // pred_check
      _
    $region7: #{tpu_custom_call.1} parent=1 // pred_check_branch
      %25 = sbr.rel (0) target = $region9
    $region8: #{tpu_custom_call.1} parent=1 // pred_region
      %27 = vsyncadd [#allocation7], 0
      %s28 = sshll.u32 %s1, 4
      %s29 = int_to_ptr.hbm [resolvable:$true] %s28
      %s30 = sshll.u32 [#allocation6], 4
      %s31 = int_to_ptr.vmem [resolvable:$true] %s30
      %36 = dma.hbm_to_vmem [thread:$0]  %s29, 512, %s31, [#allocation7], 128, 128, 8
    $region9: #{tpu_custom_call.1} parent=1 // pred_fallthru
      _
    // Predicated region
    $region10: #{tpu_custom_call.1} parent=1 // pred_check
      _
    $region11: #{tpu_custom_call.1} parent=1 // pred_check_branch
      %38 = sbr.rel (0) target = $region13
    $region12: #{tpu_custom_call.1} parent=1 // pred_region
      _
    $region13: #{tpu_custom_call.1} parent=1 // pred_fallthru
      _
    // Predicated region
    $region14: #{tpu_custom_call.1} parent=1 // pred_check
      _
    $region15: #{tpu_custom_call.1} parent=1 // pred_check_branch
      %40 = sbr.rel (0) target = $region17
    $region16: #{tpu_custom_call.1} parent=1 // pred_region
      %42 = dma.done [#allocation4], 256
    $region17: #{tpu_custom_call.1} parent=1 // pred_fallthru
      _
    // Predicated region
    $region18: #{tpu_custom_call.1} parent=1 // pred_check
      _
    $region19: #{tpu_custom_call.1} parent=1 // pred_check_branch
      %44 = sbr.rel (0) target = $region21
    $region20: #{tpu_custom_call.1} parent=1 // pred_region
      %46 = dma.done [#allocation7], 512
    $region21: #{tpu_custom_call.1} parent=1 // pred_fallthru
      _
    %p47 = scmp.eq.s32.totalorder 0, 0
    // Predicated region
    $region22: #{tpu_custom_call.1} parent=1 // pred_check
      %p48 = pneg %p47
    $region23: #{tpu_custom_call.1} parent=1 // pred_check_branch
      %50 = sbr.rel (%p48) target = $region25
    $region24: #{tpu_custom_call.1} parent=1 // pred_region
      %vm51 = vcmask 785408
      %52 = vst.msk [vmem:[#allocation2] sm:$0xff] %vm51, 0.0
      %53 = vst.msk [vmem:[#allocation2 + $0x8] sm:$0xff] %vm51, 0.0
    $region25: #{tpu_custom_call.1} parent=1 // pred_fallthru
      _
    %v54 = vld [vmem:[#allocation2] sm:$0xff]
    %v55 = vld [vmem:[#allocation2 + $0x8] sm:$0xff]
    %v56 = vld [vmem:[#allocation3] sm:$0xff]
    %v57 = vld [vmem:[#allocation3 + $0x8] sm:$0xff]
    %v58 = vld [vmem:[#allocation6] sm:$0xff]
    %v59 = vld [vmem:[#allocation6 + $0x8] sm:$0xff]
    %v60 = vld [vmem:[#allocation6 + $0x10] sm:$0xff]
    %v61 = vld [vmem:[#allocation6 + $0x18] sm:$0xff]
    %vm62 = vcmask 261120
    %v64 = vsel %vm62, %v56, 0
    %v67 = vsel %vm62, %v57, 0
    %69 = vmatpush.msra.mxu0 0.0
    %70 = vmatpush.msra.mxu0 0.0
    %71 = vmatpush.msra.mxu0 0.0
    %72 = vmatpush.msra.mxu0 0.0
    %73 = vmatpush.msra.mxu0 0.0
    %74 = vmatpush.msra.mxu0 0.0
    %75 = vmatpush.msra.mxu0 0.0
    %76 = vmatpush.msra.mxu0 0.0
    %77 = vmatpush.msra.mxu0 0.0
    %78 = vmatpush.msra.mxu0 0.0
    %79 = vmatpush.msra.mxu0 0.0
    %80 = vmatpush.msra.mxu0 0.0
    %81 = vmatpush.msra.mxu0 %v61
    %82 = vmatpush.msra.mxu0 %v60
    %83 = vmatpush.msra.mxu0 %v59
    %84 = vmatpush.msra.mxu0 %v58
    %85 = vmatmul.f32.gmra.mxu0 %v64
    %v86 = vpop.f32.mrf.mxu0
    %v87 = vadd.f32 0.0, %v86
    %88 = vmatmul.f32.gmra.mxu0 %v67
    %v89 = vpop.f32.mrf.mxu0
    %v90 = vadd.f32 0.0, %v89
    %91 = vdwg.mxu0
    %v92 = vadd.f32 %v54, %v87
    %v93 = vadd.f32 %v55, %v90
    %vm94 = vcmask 785408
    %95 = vst.msk [vmem:[#allocation2] sm:$0xff] %vm94, %v92
    %96 = vst.msk [vmem:[#allocation2 + $0x8] sm:$0xff] %vm94, %v93
    // Predicated region
    $region26: #{tpu_custom_call.1} parent=1 // pred_check
      %p97 = pneg %p47
    $region27: #{tpu_custom_call.1} parent=1 // pred_check_branch
      %99 = sbr.rel (%p97) target = $region29
    $region28: #{tpu_custom_call.1} parent=1 // pred_region
      %v100 = vld [vmem:[#allocation2] sm:$0xff]
      %v101 = vld [vmem:[#allocation2 + $0x8] sm:$0xff]
      %v102 = vld [vmem:[%s2] sm:$0x1]
      %v104 = vperm.slane %v102, 0
      %v106 = vadd.f32 %v100, %v104
      %v107 = vadd.f32 %v101, %v104
      %108 = vst.msk [vmem:[#allocation8] sm:$0xff] %vm94, %v106
      %109 = vst.msk [vmem:[#allocation8 + $0x8] sm:$0xff] %vm94, %v107
    $region29: #{tpu_custom_call.1} parent=1 // pred_fallthru
      _
    // Predicated region
    $region30: #{tpu_custom_call.1} parent=1 // pred_check
      _
    $region31: #{tpu_custom_call.1} parent=1 // pred_check_branch
      %111 = sbr.rel (0) target = $region33
    $region32: #{tpu_custom_call.1} parent=1 // pred_region
      %113 = vsyncadd [#allocation5], 0
      %s114 = sshll.u32 [#allocation8], 4
      %s115 = int_to_ptr.vmem [resolvable:$true] %s114
      %s116 = sshll.u32 %s3, 4
      %s117 = int_to_ptr.hbm [resolvable:$true] %s116
      %122 = dma.vmem_to_hbm [thread:$0]  %s115, 256, %s117, [#allocation5], 128, 128, 8
    $region33: #{tpu_custom_call.1} parent=1 // pred_fallthru
      _
    // Predicated region
    $region34: #{tpu_custom_call.1} parent=1 // pred_check
      _
    $region35: #{tpu_custom_call.1} parent=1 // pred_check_branch
      %124 = sbr.rel (0) target = $region37
    $region36: #{tpu_custom_call.1} parent=1 // pred_region
      %126 = dma.done [#allocation5], 256
    $region37: #{tpu_custom_call.1} parent=1 // pred_fallthru
      _
    %127 = vsyncpa [#allocation4], 1
    %128 = vsyncpa [#allocation7], 1
    %129 = vsyncpa [#allocation5], 1

</llo_original>
